<compile_context>
chip_gen: v7x
topology: tpu7x:2x2x1
jax: 0.10.0
libtpu: 0.0.40
codegen_flags: <defaults>
</compile_context>

<pallas_src>
import functools
import math

import jax
import jax.numpy as jnp
import numpy as np
from jax.experimental import pallas as pl
from jax.experimental.pallas import tpu as pltpu

# ----------------------------------------------------------------------------
# Constants for the mod-2π Cody–Waite range reduction (float32-friendly).
_INV_2PI = 0.15915494309189535      # 1 / (2π)
_CW_P1 = 6.28125                    # high part of 2π: 8 mantissa bits -> k*P1 exact, k < 2^16
_CW_P2 = 1.9353071795864769e-03     # 2π - P1
_HALF_PI = 1.5707963267948966

_LANES = 128
_SUBLANES = 8
_TARGET_TILE_BYTES = 2 << 20        # ~2 MiB output tile: >=85% of the HBM roofline
_VMEM_CAP_BYTES = 32 << 20          # scoped-VMEM ceiling that is safe on v5e/v6e/v7x
_MIN_PALLAS_ELEMS = 64 * 1024       # below this, per-pallas_call overhead dominates


def _round_up(x: int, m: int) -> int:
    return ((x + m - 1) // m) * m


def _cdiv(a: int, b: int) -> int:
    return -(-a // b)


def _freqs(dim: int) -> jax.Array:
    """Frequency table, identical formula to the PyTorch module (computed by XLA)."""
    half = dim // 2
    scale = math.log(10000.0) / (half - 1)
    return jnp.exp(jnp.arange(half, dtype=jnp.float32) * (-scale))


def _cody_waite(x):
    """x mod 2π via a two-term Cody–Waite split; k*P1 exact for k < 2^16."""
    k = jnp.floor(x * _INV_2PI + 0.5)
    return (x - k * _CW_P1) - k * _CW_P2            # r in [-π, π] (+ ~1e-7)


# ----------------------------------------------------------------------------
# Kernel 1: split sin/cos halves (dim % 256 == 0, so both stores are lane-aligned).
def _posenc_split_kernel(t_ref, freq_ref, out_ref, *, half):
    """t_ref (tb,1), freq_ref (1,half), out_ref (tb, 2*half)."""
    x = t_ref[...] * freq_ref[...]                  # (tb, half) via lane/sublane splats
    r = _cody_waite(x)                              # single reduction for both halves
    out_ref[:, :half] = jnp.sin(r).astype(out_ref.dtype)
    out_ref[:, half:] = jnp.cos(r).astype(out_ref.dtype)


# ----------------------------------------------------------------------------
# Kernel 2: fused phase form, optionally with g batch rows folded into the lane axis.
def _posenc_phase_kernel(t_ref, tbl_ref, out_ref, *, g):
    """t_ref (tb,g), tbl_ref (g+1, g*dim), out_ref (tb, g*dim).

    tbl rows 0..g-1: block-diagonal copies of [f, f] (freqs in lane block c, zeros
    elsewhere), so the masked multiply-add sum below reconstructs t[row]*f exactly
    (only one non-zero term per lane).  Row g: phase (0 for sin half, π/2 for cos half).
    """
    x = t_ref[:, 0:1] * tbl_ref[0:1, :]
    for c in range(1, g):                           # static unroll, g is tiny (<= 32)
        x = x + t_ref[:, c:c + 1] * tbl_ref[c:c + 1, :]
    r = _cody_waite(x)
    # |r + phase| <= 3π/2: the hardware sin's own reduction handles this accurately,
    # so no explicit wrap is needed (saves cmp+sub+select per element on the VALU).
    out_ref[...] = jnp.sin(r + tbl_ref[g:g + 1, :]).astype(out_ref.dtype)


# ----------------------------------------------------------------------------
def _tile_rows(n_rows: int, row_bytes: int) -> int:
    """Batch tile: ~TARGET bytes per output tile, multiple of 8, >=2 grid steps if possible."""
    tb = max(_SUBLANES, (_TARGET_TILE_BYTES // row_bytes) // _SUBLANES * _SUBLANES)
    tb = min(tb, _round_up(n_rows, _SUBLANES))
    # v7x has two TensorCores: give the "parallel" batch axis at least two steps.
    if n_rows > _SUBLANES and _cdiv(n_rows, tb) < 2:
        tb = _round_up(_cdiv(n_rows, 2), _SUBLANES)
    return tb


def _compiler_params(vmem_estimate: int) -> pltpu.CompilerParams:
    limit = int(min(_VMEM_CAP_BYTES, max(2 * vmem_estimate, 8 << 20)))
    return pltpu.CompilerParams(
        dimension_semantics=("parallel",),          # megacore: shard batch over TCs
        vmem_limit_bytes=limit,
    )


def positional_encoding(timesteps: jax.Array, dim: int, *, force_pallas: bool = False) -> jax.Array:
    """Pallas equivalent of PositionalEncoding(dim).forward(timesteps).

    timesteps: [B] (int or float); returns [B, dim] float32.
    """
    if dim % 2 != 0 or dim < 4:
        raise ValueError("dim must be an even integer >= 4")
    half = dim // 2

    t = jnp.asarray(timesteps).astype(jnp.float32).reshape(-1)
    b = t.shape[0]

    # Size gate: per-pallas_call overhead dominates tiny problems on every generation.
    if not force_pallas and b * dim < _MIN_PALLAS_ELEMS:
        return positional_encoding_ref(t, dim)

    freqs = _freqs(dim)

    # ------------------------------------------------------------------ split kernel
    if half % _LANES == 0:
        n_rows = b
        tb = _tile_rows(n_rows, dim * 4)
        padded = _round_up(n_rows, tb)
        t2 = t.reshape(-1, 1)
        if padded != n_rows:
            t2 = jnp.pad(t2, ((0, padded - n_rows), (0, 0)))
        freq_tbl = freqs.reshape(1, half)

        vmem_est = 2 * (tb * dim * 4 + tb * _LANES * 4 + _SUBLANES * half * 4)
        out = pl.pallas_call(
            functools.partial(_posenc_split_kernel, half=half),
            out_shape=jax.ShapeDtypeStruct((padded, dim), jnp.float32),
            grid_spec=pltpu.PrefetchScalarGridSpec(
                num_scalar_prefetch=0,
                grid=(padded // tb,),
                in_specs=[
                    pl.BlockSpec((tb, 1), lambda i: (i, 0)),     # timesteps tile
                    pl.BlockSpec((1, half), lambda i: (0, 0)),   # freqs (reused)
                ],
                out_specs=pl.BlockSpec((tb, dim), lambda i: (i, 0)),
            ),
            compiler_params=_compiler_params(vmem_est),
            cost_estimate=pl.CostEstimate(
                flops=8 * padded * dim,
                transcendentals=padded * dim,
                bytes_accessed=padded * dim * 4 + padded * 4 + half * 4,
            ),
        )(t2, freq_tbl)
        return out[:b]

    # ------------------------------------------------------------------ phase kernel
    # Lane packing: fold g batch rows into the lane axis when dim is narrower than a vreg.
    if dim % _LANES == 0:
        g = 1
    elif _LANES % dim == 0:
        g = _LANES // dim
    else:
        g = 1                       # rare odd widths: full-extent block, masked stores
    w = g * dim

    b_pad_g = _round_up(b, g)
    if b_pad_g != b:
        t = jnp.pad(t, (0, b_pad_g - b))
    n_rows = b_pad_g // g
    tb = _tile_rows(n_rows, w * 4)
    padded = _round_up(n_rows, tb)
    t2 = t.reshape(n_rows, g)
    if padded != n_rows:
        t2 = jnp.pad(t2, ((0, padded - n_rows), (0, 0)))

    # Merged table (single extra input): rows 0..g-1 = block-diagonal [f, f]; row g = phase.
    freqs_full = jnp.concatenate([freqs, freqs])                              # (dim,)
    fsel = (jnp.eye(g, dtype=jnp.float32)[:, :, None]
            * freqs_full[None, None, :]).reshape(g, w)
    phase = jnp.tile(
        jnp.concatenate([jnp.zeros((half,), jnp.float32),
                         jnp.full((half,), _HALF_PI, jnp.float32)]), g).reshape(1, w)
    tbl = jnp.concatenate([fsel, phase], axis=0)                              # (g+1, w)

    vmem_est = 2 * (tb * w * 4 + tb * _LANES * 4 + _SUBLANES * w * 4)
    out = pl.pallas_call(
        functools.partial(_posenc_phase_kernel, g=g),
        out_shape=jax.ShapeDtypeStruct((padded, w), jnp.float32),
        grid_spec=pltpu.PrefetchScalarGridSpec(
            num_scalar_prefetch=0,
            grid=(padded // tb,),
            in_specs=[
                pl.BlockSpec((tb, g), lambda i: (i, 0)),       # packed timesteps tile
                pl.BlockSpec((g + 1, w), lambda i: (0, 0)),    # freq/phase table (reused)
            ],
            out_specs=pl.BlockSpec((tb, w), lambda i: (i, 0)),
        ),
        compiler_params=_compiler_params(vmem_est),
        cost_estimate=pl.CostEstimate(
            flops=(8 + 2 * g) * padded * w,
            transcendentals=padded * w,
            bytes_accessed=padded * w * 4 + padded * g * 4 + (g + 1) * w * 4,
        ),
    )(t2, tbl)

    out = out.reshape(padded * g, dim)   # row-major un-pack: free (contiguous view)
    return out[:b]


# ----------------------------------------------------------------------------
def positional_encoding_ref(timesteps: jax.Array, dim: int) -> jax.Array:
    """Pure-JAX float32 reference, mirrors the PyTorch forward exactly."""
    emb = timesteps.astype(jnp.float32)[..., None] * _freqs(dim)
    return jnp.concatenate([jnp.sin(emb), jnp.cos(emb)], axis=-1)


def positional_encoding_exact(timesteps, dim: int) -> np.ndarray:
    """float64 sin/cos applied to the SAME float32 phase arguments the kernel sees."""
    t32 = np.asarray(timesteps, dtype=np.float32)
    f32 = np.asarray(_freqs(dim))
    arg = (t32[:, None] * f32).astype(np.float64)
    return np.concatenate([np.sin(arg), np.cos(arg)], axis=-1)


# ----------------------------------------------------------------------------
if __name__ == "__main__":
    key = jax.random.PRNGKey(0)
    k1, k2, k3, k4 = jax.random.split(key, 4)

    def _check(ts, dim, force):
        out = positional_encoding(ts, dim, force_pallas=force)
        out = np.asarray(jax.block_until_ready(out))
        assert out.shape == (ts.shape[0], dim), out.shape
        exact = positional_encoding_exact(ts, dim)
        assert np.allclose(out, exact, atol=1e-3, rtol=0.0), "mismatch vs float64 ground truth"
        ref = np.asarray(positional_encoding_ref(jnp.asarray(ts, jnp.float32), dim))
        assert np.allclose(out, ref, atol=1e-3, rtol=0.0), "mismatch vs float32 reference"

    # 1) module-sized demo (batch=8, dim=32): auto path -> size gate routes to XLA ref.
    ts_small = jax.random.randint(k1, (8,), 0, 1000).astype(jnp.float32)
    _check(ts_small, 32, force=False)

    # 2) packed phase kernel: dim=32 < 128 -> g=4 batch rows folded into the lane axis.
    ts_packed = jax.random.randint(k2, (70,), 0, 1000).astype(jnp.float32)
    _check(ts_packed, 32, force=True)

    # 3) unpacked phase kernel: dim=128 (half=64 not lane-aligned -> fused phase form).
    ts_phase = jax.random.randint(k3, (160,), 0, 1000).astype(jnp.float32)
    _check(ts_phase, 128, force=True)

    # 4) split sin/cos kernel: dim=256 (half % 128 == 0 -> two lane-dense stores).
    ts_split = jax.random.randint(k4, (192,), 0, 1000).astype(jnp.float32)
    _check(ts_split, 256, force=True)

    print("KERNEL_OK")
</pallas_src>

<mosaic_0001>
module attributes {stable_mosaic.version = 11 : i64} {
  func.func @_posenc_phase_kernel(%arg0: i32, %arg1: memref<16x4xf32, #tpu.memory_space<vmem>>, %arg2: memref<5x128xf32, #tpu.memory_space<vmem>>, %arg3: memref<16x128xf32, #tpu.memory_space<vmem>>) attributes {dimension_semantics = [#tpu.dimension_semantics<parallel>], iteration_bounds = array<i64: 2>, scalar_prefetch = 0 : i64, scratch_operands = 0 : i64, tpu.core_type = #tpu.core_type<tc>, window_params = [{transform_indices = @transform_0, window_bounds = array<i64: 16, 4>}, {pipeline_mode = #tpu.pipeline_mode<synchronous>, transform_indices = @transform_1, window_bounds = array<i64: 5, 128>}, {transform_indices = @transform_2, window_bounds = array<i64: 16, 128>}]} {
    %c0 = arith.constant 0 : index
    %c0_0 = arith.constant 0 : index
    %0 = vector.load %arg1[%c0, %c0_0] : memref<16x4xf32, #tpu.memory_space<vmem>>, vector<16x1xf32>
    %c0_1 = arith.constant 0 : index
    %c0_2 = arith.constant 0 : index
    %1 = vector.load %arg2[%c0_1, %c0_2] : memref<5x128xf32, #tpu.memory_space<vmem>>, vector<1x128xf32>
    %2 = vector.broadcast %0 : vector<16x1xf32> to vector<16x128xf32>
    %3 = vector.broadcast %1 : vector<1x128xf32> to vector<16x128xf32>
    %4 = arith.mulf %2, %3 : vector<16x128xf32>
    %c0_3 = arith.constant 0 : index
    %c1 = arith.constant 1 : index
    %5 = vector.load %arg1[%c0_3, %c1] : memref<16x4xf32, #tpu.memory_space<vmem>>, vector<16x1xf32>
    %c1_4 = arith.constant 1 : index
    %c0_5 = arith.constant 0 : index
    %6 = vector.load %arg2[%c1_4, %c0_5] : memref<5x128xf32, #tpu.memory_space<vmem>>, vector<1x128xf32>
    %7 = vector.broadcast %5 : vector<16x1xf32> to vector<16x128xf32>
    %8 = vector.broadcast %6 : vector<1x128xf32> to vector<16x128xf32>
    %9 = arith.mulf %7, %8 : vector<16x128xf32>
    %10 = arith.addf %4, %9 : vector<16x128xf32>
    %c0_6 = arith.constant 0 : index
    %c2 = arith.constant 2 : index
    %11 = vector.load %arg1[%c0_6, %c2] : memref<16x4xf32, #tpu.memory_space<vmem>>, vector<16x1xf32>
    %c2_7 = arith.constant 2 : index
    %c0_8 = arith.constant 0 : index
    %12 = vector.load %arg2[%c2_7, %c0_8] : memref<5x128xf32, #tpu.memory_space<vmem>>, vector<1x128xf32>
    %13 = vector.broadcast %11 : vector<16x1xf32> to vector<16x128xf32>
    %14 = vector.broadcast %12 : vector<1x128xf32> to vector<16x128xf32>
    %15 = arith.mulf %13, %14 : vector<16x128xf32>
    %16 = arith.addf %10, %15 : vector<16x128xf32>
    %c0_9 = arith.constant 0 : index
    %c3 = arith.constant 3 : index
    %17 = vector.load %arg1[%c0_9, %c3] : memref<16x4xf32, #tpu.memory_space<vmem>>, vector<16x1xf32>
    %c3_10 = arith.constant 3 : index
    %c0_11 = arith.constant 0 : index
    %18 = vector.load %arg2[%c3_10, %c0_11] : memref<5x128xf32, #tpu.memory_space<vmem>>, vector<1x128xf32>
    %19 = vector.broadcast %17 : vector<16x1xf32> to vector<16x128xf32>
    %20 = vector.broadcast %18 : vector<1x128xf32> to vector<16x128xf32>
    %21 = arith.mulf %19, %20 : vector<16x128xf32>
    %22 = arith.addf %16, %21 : vector<16x128xf32>
    %cst = arith.constant 0.159154937 : f32
    %23 = vector.broadcast %cst : f32 to vector<16x128xf32>
    %24 = arith.mulf %22, %23 : vector<16x128xf32>
    %cst_12 = arith.constant 5.000000e-01 : f32
    %25 = vector.broadcast %cst_12 : f32 to vector<16x128xf32>
    %26 = arith.addf %24, %25 : vector<16x128xf32>
    %27 = math.floor %26 : vector<16x128xf32>
    %cst_13 = arith.constant 6.281250e+00 : f32
    %28 = vector.broadcast %cst_13 : f32 to vector<16x128xf32>
    %29 = arith.mulf %27, %28 : vector<16x128xf32>
    %30 = arith.subf %22, %29 : vector<16x128xf32>
    %cst_14 = arith.constant 0.00193530717 : f32
    %31 = vector.broadcast %cst_14 : f32 to vector<16x128xf32>
    %32 = arith.mulf %27, %31 : vector<16x128xf32>
    %33 = arith.subf %30, %32 : vector<16x128xf32>
    %c4 = arith.constant 4 : index
    %c0_15 = arith.constant 0 : index
    %34 = vector.load %arg2[%c4, %c0_15] : memref<5x128xf32, #tpu.memory_space<vmem>>, vector<1x128xf32>
    %35 = vector.broadcast %34 : vector<1x128xf32> to vector<16x128xf32>
    %36 = arith.addf %33, %35 : vector<16x128xf32>
    %37 = math.sin %36 : vector<16x128xf32>
    %c0_16 = arith.constant 0 : index
    %c0_17 = arith.constant 0 : index
    %38 = vector.load %arg3[%c0_16, %c0_17] : memref<16x128xf32, #tpu.memory_space<vmem>>, vector<16x128xf32>
    tpu.vector_store %arg3[%c0_16, %c0_17], %37 {strides = array<i32>} : memref<16x128xf32, #tpu.memory_space<vmem>>, vector<16x128xf32>,
    return
  }
  func.func @transform_0(%arg0: i32) -> (i32, i32) {
    %c0_i32 = arith.constant 0 : i32
    %c0_i32_0 = arith.constant 0 : i32
    return %arg0, %c0_i32 : i32, i32
  }
  func.func @transform_1(%arg0: i32) -> (i32, i32) {
    %c0_i32 = arith.constant 0 : i32
    %c0_i32_0 = arith.constant 0 : i32
    %c0_i32_1 = arith.constant 0 : i32
    return %c0_i32, %c0_i32_0 : i32, i32
  }
  func.func @transform_2(%arg0: i32) -> (i32, i32) {
    %c0_i32 = arith.constant 0 : i32
    %c0_i32_0 = arith.constant 0 : i32
    return %arg0, %c0_i32 : i32, i32
  }
}

</mosaic_0001>

<llo_original>
// kernel: tpu_custom_call.1
$region0: #{tpu_custom_call.1}
  #allocation0 [shape = 'u32[]', space=smem, size = 0x4, offset = 0x4, fixed_abs, tag = 'smem constant byte address 0x4 - core index']
  #allocation1 [shape = 'u32[144,128]{1,0:T(1,128)}', space=vmem, size = 0x12000, scoped, tag = 'internal scratch']
  %s0 = inlined_call_operand.vmem [shape: f32[32,4], index: 0, kind: input, shape index: {}]
  %s1 = inlined_call_operand.vmem [shape: f32[5,128], index: 1, kind: input, shape index: {}]
  %s2 = inlined_call_operand.hbm [shape: f32[32,128], index: 2, kind: output, shape index: {}]
  %s3 = sld [smem:[#allocation0]]
  $region41: #{tpu_custom_call.1} parent=0
    _
  %s5 = ssub.s32 1, %s3
  %s6 = scalar_select 0, %s5, %s3
  $region1: #{tpu_custom_call.1} parent=0
    #allocation2 [shape = 'u8[16384]{0}', space=vmem, size = 0x4000, scoped, tag = 'output window, operand 0']
    #allocation3 [shape = 's32[2]{0}', space=sflag, size = 0x8, scoped, tag = 'scoped memory for tpu_custom_call.1']
    %7 = vsyncpa [#allocation3], 0
    %s8 = scalar_lea.sflag [#allocation3], 1
    %9 = vsyncpa %s8, 0
    loop: start=0, step=1, limit=4
    $region2: #{tpu_custom_call.1} parent=1 // loop_pre_header
      _
    $region3: #{tpu_custom_call.1} parent=1 // loop_header
      %s11 = sphi 0, %s15
      %p12 = scmp.ge.s32.totalorder %s11, 4
      %s21 = sphi 0, %s23
      %s24 = sphi 0, %s21
      %s25 = sphi 0, %s24
      %s41 = sphi 0, %s25
      %s45 = sphi 0, %s45
      %s47 = sphi 0, %s45
      %s48 = sphi 0, %s47
      %s62 = sphi 0, %s48
      %s68 = sphi 0, %s70
      %s71 = sphi 0, %s68
      %s72 = sphi 0, %s71
      %s88 = sphi 0, %s72
    $region4: #{tpu_custom_call.1} parent=1 // loop_header_branch
      %14 = sbr.rel (%p12) target = $region8
    $region5: #{tpu_custom_call.1} parent=1 // loop_body
      %s16 = ssub.s32 %s11, 1
      %s17 = ssub.s32 %s11, 2
      %s18 = sadd.s32 %s11, 1
      %s19 = ssub.s32 %s11, %s18
      %p20 = scmp.eq.s32.totalorder %s19, 0
      %s22 = sadd.s32 %s21, 1
      %s23 = scalar_select %p20, %s21, %s22
      %p26 = pneg %p20
      %p27 = scmp.eq.s32.totalorder %s11, 1
      %p28 = por %p26, %p27
      %p29 = scmp.ne.s32.totalorder %s21, %s24
      %p30 = scmp.eq.s32.totalorder %s11, 0
      %p31 = por %p29, %p30
      %p32 = scmp.ne.s32.totalorder %s21, %s24
      %p33 = scmp.eq.s32.totalorder %s16, 1
      %p34 = por %p32, %p33
      %p35 = scmp.ne.s32.totalorder %s24, %s25
      %p36 = scmp.eq.s32.totalorder %s16, 0
      %p37 = por %p35, %p36
      %p38 = scmp.ne.s32.totalorder %s24, %s25
      %p39 = scmp.eq.s32.totalorder %s17, 1
      %p40 = por %p38, %p39
      %p42 = scmp.ne.s32.totalorder %s25, %s41
      %p43 = scmp.eq.s32.totalorder %s17, 0
      %p44 = por %p42, %p43
      %s46 = sadd.s32 %s45, 1
      %p49 = scmp.eq.s32.totalorder %s11, 1
      %p50 = scmp.ne.s32.totalorder %s45, %s47
      %p51 = scmp.eq.s32.totalorder %s11, 0
      %p52 = por %p50, %p51
      %p53 = scmp.ne.s32.totalorder %s45, %s47
      %p54 = scmp.eq.s32.totalorder %s16, 1
      %p55 = por %p53, %p54
      %p56 = scmp.ne.s32.totalorder %s47, %s48
      %p57 = scmp.eq.s32.totalorder %s16, 0
      %p58 = por %p56, %p57
      %p59 = scmp.ne.s32.totalorder %s47, %s48
      %p60 = scmp.eq.s32.totalorder %s17, 1
      %p61 = por %p59, %p60
      %p63 = scmp.ne.s32.totalorder %s48, %s62
      %p64 = scmp.eq.s32.totalorder %s17, 0
      %p65 = por %p63, %p64
      %s66 = ssub.s32 %s11, %s18
      %p67 = scmp.eq.s32.totalorder %s66, 0
      %s69 = sadd.s32 %s68, 1
      %s70 = scalar_select %p67, %s68, %s69
      %p73 = pneg %p67
      %p74 = scmp.eq.s32.totalorder %s11, 1
      %p75 = por %p73, %p74
      %p76 = scmp.ne.s32.totalorder %s68, %s71
      %p77 = scmp.eq.s32.totalorder %s11, 0
      %p78 = por %p76, %p77
      %p79 = scmp.ne.s32.totalorder %s68, %s71
      %p80 = scmp.eq.s32.totalorder %s16, 1
      %p81 = por %p79, %p80
      %p82 = scmp.ne.s32.totalorder %s71, %s72
      %p83 = scmp.eq.s32.totalorder %s16, 0
      %p84 = por %p82, %p83
      %p85 = scmp.ne.s32.totalorder %s71, %s72
      %p86 = scmp.eq.s32.totalorder %s17, 1
      %p87 = por %p85, %p86
      %p89 = scmp.ne.s32.totalorder %s72, %s88
      %p90 = scmp.eq.s32.totalorder %s17, 0
      %p91 = por %p89, %p90
      %p92 = scmp.le.s32.totalorder 1, %s11
      %p93 = scmp.lt.s32.totalorder %s11, 3
      %p94 = pnand %p92, %p93
      %p95 = pneg %p94
      // Predicated region
      $region9: #{tpu_custom_call.1} parent=5 // pred_check
        _
      $region10: #{tpu_custom_call.1} parent=5 // pred_check_branch
        %97 = sbr.rel (%p94) target = $region12
      $region11: #{tpu_custom_call.1} parent=5 // pred_region
        %s98 = ssub.s32 %s11, 1
        // Predicated region
        $region13: #{tpu_custom_call.1} parent=11 // pred_check
          %p99 = pneg %p58
        $region14: #{tpu_custom_call.1} parent=11 // pred_check_branch
          %101 = sbr.rel (%p99) target = $region16
        $region15: #{tpu_custom_call.1} parent=11 // pred_region
          _
        $region16: #{tpu_custom_call.1} parent=11 // pred_fallthru
          _
      $region12: #{tpu_custom_call.1} parent=5 // pred_fallthru
        _
      %p102 = scmp.lt.s32.totalorder %s11, 2
      // Predicated region
      $region17: #{tpu_custom_call.1} parent=5 // pred_check
        %p103 = pneg %p102
      $region18: #{tpu_custom_call.1} parent=5 // pred_check_branch
        %105 = sbr.rel (%p103) target = $region20
      $region19: #{tpu_custom_call.1} parent=5 // pred_region
        // Predicated region
        $region21: #{tpu_custom_call.1} parent=19 // pred_check
          %p106 = pneg %p31
        $region22: #{tpu_custom_call.1} parent=19 // pred_check_branch
          %108 = sbr.rel (%p106) target = $region24
        $region23: #{tpu_custom_call.1} parent=19 // pred_region
          %s109 = smul.u32 2, %s11
          %p110 = scmp.lt.s32.totalorder %s109, 3
          %s111 = scalar_select %p110, %s109, 3
          %s112 = smul.addr %s111, 8
          %s113 = scalar_lea.vmem %s0, %s112
          %s114 = smul.u32 2, %s11
        $region24: #{tpu_custom_call.1} parent=19 // pred_fallthru
          _
      $region20: #{tpu_custom_call.1} parent=5 // pred_fallthru
        _
      %p115 = scmp.le.s32.totalorder 1, %s11
      %p116 = scmp.lt.s32.totalorder %s11, 3
      %p117 = pnand %p115, %p116
      %p118 = pneg %p117
      // Predicated region
      $region25: #{tpu_custom_call.1} parent=5 // pred_check
        _
      $region26: #{tpu_custom_call.1} parent=5 // pred_check_branch
        %120 = sbr.rel (%p117) target = $region28
      $region27: #{tpu_custom_call.1} parent=5 // pred_region
        %s121 = ssub.s32 %s11, 1
        %s122 = smul.u32 2, %s16
        %p123 = scmp.lt.s32.totalorder %s122, 3
        %s124 = scalar_select %p123, %s122, 3
        %s125 = smul.addr %s124, 8
        %s126 = scalar_lea.vmem %s0, %s125
        %p127 = pneg %p37
        %p128 = pneg %p34
        %p129 = pneg %p58
        %p130 = pneg %p55
        %p131 = pneg %p84
        %p132 = pneg %p81
        %s133 = sand.u32 %s71, 1
        %s134 = scalar_lea.sflag [#allocation3], %s133
        %s135 = sand.u32 %s71, 1
        %s136 = smul.addr %s135, 16
        %s137 = scalar_lea.vmem [#allocation2], %s136
        %s138 = smul.u32 2, %s16
        %p139 = scmp.lt.s32.totalorder %s138, 3
        %s140 = scalar_select %p139, %s138, 3
        %s141 = smul.addr %s140, 8
        %s142 = scalar_lea.vmem %s0, %s141
        %s143 = smul.u32 2, %s16
        %s144 = smul.u32 2, %s16
        %v145 = vld [vmem:[%s142] sm:$0xff]
        %v146 = vld [vmem:[%s142 + $0x8] sm:$0xff]
        %v147 = vld [vmem:[%s1] sm:$0x1]
        %149 = vset.pattern.permute.xlu0 0
        %150 = vperm.xlu0 %149, %v145
        %v151 = vpop.permute.xlu0 %150
        %154 = vset.pattern.permute.xlu0 0
        %155 = vperm.xlu0 %154, %v146
        %v156 = vpop.permute.xlu0 %155
        %v158 = vlaneseq
        %v159 = vshrl.u32 %v158, 7
        %v160 = vsub.s32 0, %v159
        %v161 = vrot.slane %v147, %v160
        %v162 = vmul.f32 %v151, %v161
        %v163 = vmul.f32 %v156, %v161
        %v164 = vld [vmem:[%s1 + $0x1] sm:$0x1]
        %165 = vset.pattern.permute.xlu0 1
        %166 = vperm.xlu0 %165, %v145
        %v167 = vpop.permute.xlu0 %166
        %169 = vset.pattern.permute.xlu0 1
        %170 = vperm.xlu0 %169, %v146
        %v171 = vpop.permute.xlu0 %170
        %v173 = vlaneseq
        %v174 = vshrl.u32 %v173, 7
        %v175 = vsub.s32 0, %v174
        %v176 = vrot.slane %v164, %v175
        %v177 = vmul.f32 %v167, %v176
        %v178 = vmul.f32 %v171, %v176
        %v179 = vadd.f32 %v162, %v177
        %v180 = vadd.f32 %v163, %v178
        %v181 = vld [vmem:[%s1 + $0x2] sm:$0x1]
        %182 = vset.pattern.permute.xlu0 2
        %183 = vperm.xlu0 %182, %v145
        %v184 = vpop.permute.xlu0 %183
        %186 = vset.pattern.permute.xlu0 2
        %187 = vperm.xlu0 %186, %v146
        %v188 = vpop.permute.xlu0 %187
        %v190 = vlaneseq
        %v191 = vshrl.u32 %v190, 7
        %v192 = vsub.s32 0, %v191
        %v193 = vrot.slane %v181, %v192
        %v194 = vmul.f32 %v184, %v193
        %v195 = vmul.f32 %v188, %v193
        %v196 = vadd.f32 %v179, %v194
        %v197 = vadd.f32 %v180, %v195
        %v198 = vld [vmem:[%s1 + $0x3] sm:$0x1]
        %199 = vset.pattern.permute.xlu0 3
        %200 = vperm.xlu0 %199, %v145
        %v201 = vpop.permute.xlu0 %200
        %203 = vset.pattern.permute.xlu0 3
        %204 = vperm.xlu0 %203, %v146
        %v205 = vpop.permute.xlu0 %204
        %v207 = vlaneseq
        %v208 = vshrl.u32 %v207, 7
        %v209 = vsub.s32 0, %v208
        %v210 = vrot.slane %v198, %v209
        %v211 = vmul.f32 %v201, %v210
        %v212 = vmul.f32 %v205, %v210
        %v213 = vadd.f32 %v196, %v211
        %v214 = vadd.f32 %v197, %v212
        %v215 = vmul.f32 %v213, 0.15915494
        %v216 = vmul.f32 %v214, 0.15915494
        %v217 = vadd.f32 %v215, 0.5
        %v218 = vadd.f32 %v216, 0.5
        %v219 = vfloor.f32 %v217
        %v220 = vfloor.f32 %v218
        %v221 = vmul.f32 %v219, 6.28125
        %v222 = vmul.f32 %v220, 6.28125
        %v223 = vsub.f32 %v213, %v221
        %v224 = vsub.f32 %v214, %v222
        %v225 = vmul.f32 %v219, 0.0019353072
        %v226 = vmul.f32 %v220, 0.0019353072
        %v227 = vsub.f32 %v223, %v225
        %v228 = vsub.f32 %v224, %v226
        %v229 = vld [vmem:[%s1 + $0x4] sm:$0x1]
        %v230 = vlaneseq
        %v231 = vshrl.u32 %v230, 7
        %v232 = vsub.s32 0, %v231
        %v233 = vrot.slane %v229, %v232
        %v234 = vadd.f32 %v227, %v233
        %v235 = vadd.f32 %v228, %v233
        %v236 = vand.u32 2147483647, %v234
        %vm237 = vcmp.le.f32.partialorder %v236, 0.7853982
        %vm238 = vcmp.lt.s32.totalorder %v234, 0
        %v239 = vand.u32 %v234, 2139095040
        %v240 = vshrl.u32 %v239, 23
        %v241 = vsub.s32 %v240, 127
        %v242 = vand.u32 2147483647, %v234
        %v243 = vand.u32 %v242, 8388607
        %v244 = vor.u32 %v243, 8388608
        %v245 = vsub.s32 0, %v244
        %v246 = vadd.s32 %v241, 1
        %vm247 = vcmp.gt.s32.totalorder %v246, 0
        %v248 = vsel %vm247, %v246, 0
        %v249 = vshrl.u32 %v248, 5
        %v250 = vand.u32 %v248, 31
        %v251 = vsub.s32 32, %v250
        %v252 = vshrl.u32 683565275, %v251
        %v253 = vshll.u32 683565275, %v250
        %v254 = vshrl.u32 2475754826, %v251
        %v255 = vor.u32 %v253, %v254
        %v256 = vshll.u32 2475754826, %v250
        %v257 = vshrl.u32 2131351028, %v251
        %v258 = vor.u32 %v256, %v257
        %v259 = vshll.u32 2131351028, %v250
        %v260 = vshrl.u32 2102212464, %v251
        %v261 = vor.u32 %v259, %v260
        %v262 = vshll.u32 2102212464, %v250
        %v263 = vshrl.u32 920167782, %v251
        %v264 = vor.u32 %v262, %v263
        %v265 = vshll.u32 920167782, %v250
        %v266 = vshrl.u32 1326507024, %v251
        %v267 = vor.u32 %v265, %v266
        %vm268 = vcmp.lt.s32.totalorder %v249, 1
        %vm269 = vcmp.lt.s32.totalorder %v249, 2
        %vm270 = vcmp.lt.s32.totalorder %v249, 3
        %vm271 = vcmp.lt.s32.totalorder %v249, 4
        %v272 = vsel %vm268, %v252, %v255
        %v273 = vsel %vm271, %v261, 2102212464
        %v274 = vsel %vm270, %v258, %v273
        %v275 = vsel %vm269, %v272, %v274
        %v276 = vsel %vm268, %v255, %v258
        %v277 = vsel %vm271, %v264, 920167782
        %v278 = vsel %vm270, %v261, %v277
        %v279 = vsel %vm269, %v276, %v278
        %v280 = vsel %vm268, %v258, %v261
        %v281 = vsel %vm271, %v267, 1326507024
        %v282 = vsel %vm270, %v264, %v281
        %v283 = vsel %vm269, %v280, %v282
        %v284 = vshll.u32 %v244, 8
        %v285 = vmul.u32.u64.compose %v284, %v283
        %v286 = vextract.low.u32 %v285
        %v287 = vextract.high.u32 %v285
        %v288 = vmul.u32.u64.compose %v284, %v279
        %v289 = vextract.low.u32 %v288
        %v290 = vextract.high.u32 %v288
        %v291 = vmul.u32 %v284, %v275
        %v292 = vadd.s32 %v287, %v289
        %vm293 = vc.u32 %v287, %v289
        %v294 = vadd.s32 %v290, 1
        %v295 = vsel %vm293, %v294, %v290
        %v296 = vadd.s32 %v291, %v295
        %v297 = vadd.s32 %v296, 536870912
        %v298 = vshrl.u32 %v297, 30
        %v299 = vshll.u32 %v298, 30
        %v300 = vsub.s32 %v296, %v299
        %vm301 = vcmp.lt.s32.totalorder %v300, 0
        %v302 = vsub.s32 0, %v300
        %v303 = vsel %vm301, %v302, %v300
        %v304 = vclz %v303
        %v305 = vsub.s32 %v304, 2
        %vm306 = vcmp.gt.s32.totalorder 0, %v305
        %v307 = vsel %vm306, 0, %v305
        %v308 = vsub.s32 32, %v307
        %v309 = vshll.u32 %v300, %v307
        %v310 = vshrl.u32 %v292, %v308
        %v311 = vor.u32 %v309, %v310
        %v312 = vsub.s32 4294967266, %v307
        %v313 = vadd.s32 %v312, 127
        %v314 = vshll.u32 %v313, 23
        %v315 = vor.u32 4788187, %v314
        %v316 = vand.u32 2147483647, %v315
        %v318 = vcvt.s32.f32 %v311
        %v319 = vmul.f32 %v318, %v316
        %v320 = vxor.u32 %v319, 2147483648
        %v321 = vsel %vm238, %v320, %v319
        %v322 = vsub.s32 4, %v298
        %v323 = vsel %vm238, %v322, %v298
        %v324 = vsel %vm237, %v234, %v321
        %v325 = vsel %vm237, 0, %v323
        %v326 = vcosq.f32.pop %v324
        %v327 = vsinq.f32.pop %v324
        %vm328 = vweird.f32 %v234
        %v329 = vadd.s32 %v325, 3
        %v330 = vand.u32 %v329, 3
        %vm331 = vcmp.lt.s32.totalorder %v330, 2
        %vm332 = vcmp.eq.s32.totalorder %v330, 0
        %v333 = vxor.u32 %v327, 2147483648
        %v334 = vsel %vm332, %v326, %v333
        %vm335 = vcmp.eq.s32.totalorder %v330, 2
        %v336 = vxor.u32 %v326, 2147483648
        %v337 = vsel %vm335, %v336, %v327
        %v338 = vsel %vm331, %v334, %v337
        %v339 = vsel %vm328, nan, %v338
        %v340 = vand.u32 2147483647, %v235
        %vm341 = vcmp.le.f32.partialorder %v340, 0.7853982
        %vm342 = vcmp.lt.s32.totalorder %v235, 0
        %v343 = vand.u32 %v235, 2139095040
        %v344 = vshrl.u32 %v343, 23
        %v345 = vsub.s32 %v344, 127
        %v346 = vand.u32 2147483647, %v235
        %v347 = vand.u32 %v346, 8388607
        %v348 = vor.u32 %v347, 8388608
        %v349 = vsub.s32 0, %v348
        %v350 = vadd.s32 %v345, 1
        %vm351 = vcmp.gt.s32.totalorder %v350, 0
        %v352 = vsel %vm351, %v350, 0
        %v353 = vshrl.u32 %v352, 5
        %v354 = vand.u32 %v352, 31
        %v355 = vsub.s32 32, %v354
        %v356 = vshrl.u32 683565275, %v355
        %v357 = vshll.u32 683565275, %v354
        %v358 = vshrl.u32 2475754826, %v355
        %v359 = vor.u32 %v357, %v358
        %v360 = vshll.u32 2475754826, %v354
        %v361 = vshrl.u32 2131351028, %v355
        %v362 = vor.u32 %v360, %v361
        %v363 = vshll.u32 2131351028, %v354
        %v364 = vshrl.u32 2102212464, %v355
        %v365 = vor.u32 %v363, %v364
        %v366 = vshll.u32 2102212464, %v354
        %v367 = vshrl.u32 920167782, %v355
        %v368 = vor.u32 %v366, %v367
        %v369 = vshll.u32 920167782, %v354
        %v370 = vshrl.u32 1326507024, %v355
        %v371 = vor.u32 %v369, %v370
        %vm372 = vcmp.lt.s32.totalorder %v353, 1
        %vm373 = vcmp.lt.s32.totalorder %v353, 2
        %vm374 = vcmp.lt.s32.totalorder %v353, 3
        %vm375 = vcmp.lt.s32.totalorder %v353, 4
        %v376 = vsel %vm372, %v356, %v359
        %v377 = vsel %vm375, %v365, 2102212464
        %v378 = vsel %vm374, %v362, %v377
        %v379 = vsel %vm373, %v376, %v378
        %v380 = vsel %vm372, %v359, %v362
        %v381 = vsel %vm375, %v368, 920167782
        %v382 = vsel %vm374, %v365, %v381
        %v383 = vsel %vm373, %v380, %v382
        %v384 = vsel %vm372, %v362, %v365
        %v385 = vsel %vm375, %v371, 1326507024
        %v386 = vsel %vm374, %v368, %v385
        %v387 = vsel %vm373, %v384, %v386
        %v388 = vshll.u32 %v348, 8
        %v389 = vmul.u32.u64.compose %v388, %v387
        %v390 = vextract.low.u32 %v389
        %v391 = vextract.high.u32 %v389
        %v392 = vmul.u32.u64.compose %v388, %v383
        %v393 = vextract.low.u32 %v392
        %v394 = vextract.high.u32 %v392
        %v395 = vmul.u32 %v388, %v379
        %v396 = vadd.s32 %v391, %v393
        %vm397 = vc.u32 %v391, %v393
        %v398 = vadd.s32 %v394, 1
        %v399 = vsel %vm397, %v398, %v394
        %v400 = vadd.s32 %v395, %v399
        %v401 = vadd.s32 %v400, 536870912
        %v402 = vshrl.u32 %v401, 30
        %v403 = vshll.u32 %v402, 30
        %v404 = vsub.s32 %v400, %v403
        %vm405 = vcmp.lt.s32.totalorder %v404, 0
        %v406 = vsub.s32 0, %v404
        %v407 = vsel %vm405, %v406, %v404
        %v408 = vclz %v407
        %v409 = vsub.s32 %v408, 2
        %vm410 = vcmp.gt.s32.totalorder 0, %v409
        %v411 = vsel %vm410, 0, %v409
        %v412 = vsub.s32 32, %v411
        %v413 = vshll.u32 %v404, %v411
        %v414 = vshrl.u32 %v396, %v412
        %v415 = vor.u32 %v413, %v414
        %v416 = vsub.s32 4294967266, %v411
        %v417 = vadd.s32 %v416, 127
        %v418 = vshll.u32 %v417, 23
        %v419 = vor.u32 4788187, %v418
        %v420 = vand.u32 2147483647, %v419
        %v422 = vcvt.s32.f32 %v415
        %v423 = vmul.f32 %v422, %v420
        %v424 = vxor.u32 %v423, 2147483648
        %v425 = vsel %vm342, %v424, %v423
        %v426 = vsub.s32 4, %v402
        %v427 = vsel %vm342, %v426, %v402
        %v428 = vsel %vm341, %v235, %v425
        %v429 = vsel %vm341, 0, %v427
        %v430 = vcosq.f32.pop %v428
        %v431 = vsinq.f32.pop %v428
        %vm432 = vweird.f32 %v235
        %v433 = vadd.s32 %v429, 3
        %v434 = vand.u32 %v433, 3
        %vm435 = vcmp.lt.s32.totalorder %v434, 2
        %vm436 = vcmp.eq.s32.totalorder %v434, 0
        %v437 = vxor.u32 %v431, 2147483648
        %v438 = vsel %vm436, %v430, %v437
        %vm439 = vcmp.eq.s32.totalorder %v434, 2
        %v440 = vxor.u32 %v430, 2147483648
        %v441 = vsel %vm439, %v440, %v431
        %v442 = vsel %vm435, %v438, %v441
        %v443 = vsel %vm432, nan, %v442
        %444 = vst [vmem:[%s137] sm:$0xff] %v339
        %445 = vst [vmem:[%s137 + $0x8] sm:$0xff] %v443
        %s446 = sand.u32 %s71, 1
        %s447 = scalar_lea.sflag [#allocation3], %s446
        %s448 = sand.u32 %s71, 1
        %s449 = smul.addr %s448, 16
        %s450 = scalar_lea.vmem [#allocation2], %s449
        // Predicated region
        $region29: #{tpu_custom_call.1} parent=27 // pred_check
          %p451 = pneg %p81
        $region30: #{tpu_custom_call.1} parent=27 // pred_check_branch
          %453 = sbr.rel (%p451) target = $region32
        $region31: #{tpu_custom_call.1} parent=27 // pred_region
          %s454 = smul.u32 2, %s16
          %s456 = ssub.s32 256, 256
          %457 = vsyncadd %s447, %s456
          %s458 = smul.addr %s454, 128
          %s459 = scalar_lea.hbm %s2, %s458
          %s460 = sshll.u32 %s450, 4
          %s461 = int_to_ptr.vmem [resolvable:$true] %s460
          %466 = dma.vmem_to_hbm [thread:$0]  %s461, 256, %s459, %s447, 128, 128, 8
        $region32: #{tpu_custom_call.1} parent=27 // pred_fallthru
          _
      $region28: #{tpu_custom_call.1} parent=5 // pred_fallthru
        _
      %p467 = scmp.le.s32.totalorder 2, %s11
      // Predicated region
      $region33: #{tpu_custom_call.1} parent=5 // pred_check
        %p468 = pneg %p467
      $region34: #{tpu_custom_call.1} parent=5 // pred_check_branch
        %470 = sbr.rel (%p468) target = $region36
      $region35: #{tpu_custom_call.1} parent=5 // pred_region
        %s471 = ssub.s32 %s11, 2
        // Predicated region
        $region37: #{tpu_custom_call.1} parent=35 // pred_check
          %p472 = pneg %p87
        $region38: #{tpu_custom_call.1} parent=35 // pred_check_branch
          %474 = sbr.rel (%p472) target = $region40
        $region39: #{tpu_custom_call.1} parent=35 // pred_region
          %s475 = sand.u32 %s72, 1
          %s476 = scalar_lea.sflag [#allocation3], %s475
          %s477 = sand.u32 %s72, 1
          %s478 = smul.addr %s477, 16
          %s479 = scalar_lea.vmem [#allocation2], %s478
          %480 = dma.done %s476, 256
        $region40: #{tpu_custom_call.1} parent=35 // pred_fallthru
          _
      $region36: #{tpu_custom_call.1} parent=5 // pred_fallthru
        _
    $region6: #{tpu_custom_call.1} parent=1 // loop_footer
      %s15 = sadd.s32 1, %s11
    $region7: #{tpu_custom_call.1} parent=1 // loop_footer_branch
      %10 = sbr.rel target = $region3
    $region8: #{tpu_custom_call.1} parent=1 // loop_exit
      _
    %481 = vsyncpa [#allocation3], 1
    %s482 = scalar_lea.sflag [#allocation3], 1
    %483 = vsyncpa %s482, 1

</llo_original>
